<compile_context>
chip_gen: v6e
topology: v6e:2x2x1
jax: 0.10.0
libtpu: 0.0.40
codegen_flags: <defaults>
</compile_context>

<pallas_src>
import functools

import jax
import jax.numpy as jnp
from jax.experimental import pallas as pl
from jax.experimental.pallas import tpu as pltpu

_LANE = 128
_SUBLANE = 8


def _round_up(x, m):
    return ((x + m - 1) // m) * m


def _vmem_capacity_bytes():
    """Best-effort physical VMEM size; conservative (v7x-sized) fallback."""
    try:
        info = pltpu.get_tpu_info()
        for name in ("vmem_capacity_bytes", "vmem_size_bytes", "vmem_bytes"):
            v = getattr(info, name, None)
            if v:
                return int(v)
    except Exception:
        pass
    return 64 << 20


def _default_block_b(B, Dq, Dk, Np8, HP, NPL, has_mask_input, vmem_cap):
    """Pick the batch tile from a VMEM budget (double-buffered blocks + live temps)."""
    per_row = 4 * (
        2 * (Dq + 2 * Np8 * Dk + (Np8 if has_mask_input else 0) + HP + NPL)  # 2x-buffered blocks
        + 3 * Np8 * Dk + 2 * HP + 6 * Np8                                    # f32 intermediates
    )
    small_vmem = vmem_cap <= (64 << 20)           # v7x-class: 64 MiB VMEM, 2 TensorCores
    budget = min(vmem_cap // 4, 24 << 20)
    tb = max(_SUBLANE, min(int(budget // max(per_row, 1)), 128 if small_vmem else 256))
    tb = min(_round_up(tb, _SUBLANE), _round_up(B, _SUBLANE))
    if small_vmem and B > _SUBLANE:
        # keep >= 2 grid steps so dimension_semantics=("parallel",) can shard across cores
        tb = min(tb, _round_up(pl.cdiv(B, 2), _SUBLANE))
    return max(tb, _SUBLANE)


def _gat_kernel(q_ref, keys_ref, vals_ref, a_ref, c_ref, wv_ref, bv_ref, *rest,
                n_valid, mask_kind):
    f32 = jnp.float32
    if mask_kind == "ref":
        mask_ref, ctx_ref, attn_ref = rest
    else:
        ctx_ref, attn_ref = rest

    tb, np8, dk = keys_ref.shape
    npl = attn_ref.shape[1]

    keys = keys_ref[...]                                           # (TB, Np8, Dk) f32
    vals = vals_ref[...]                                           # (TB, Np8, Dk) f32

    # ---- folded query/key projection: qk = x @ A + c (tiny f32 MXU matmul) ----
    qk = jnp.dot(q_ref[...], a_ref[...],
                 preferred_element_type=f32) + c_ref[...]          # (TB, Dk)

    # ---- scores: VPU multiply + lane reduce (no M=1 batched MXU matmuls) ----
    scores = jnp.sum(qk[:, None, :] * keys, axis=-1)               # (TB, Np8)

    if mask_kind == "ref":
        valid = mask_ref[...] != 0
    elif mask_kind == "iota":   # only sublane padding needs masking: generate, don't DMA
        valid = jax.lax.broadcasted_iota(jnp.int32, (tb, np8), 1) < n_valid
    else:
        valid = None

    if valid is not None:
        scores = jnp.where(valid, scores, -1e30)                   # finite "-inf"

    # ---- softmax over keys (f32); fully-masked rows -> all-zero weights ----
    m = jnp.max(scores, axis=-1, keepdims=True)
    p = jnp.exp(scores - m)
    if valid is not None:
        p = jnp.where(valid, p, 0.0)
    denom = jnp.sum(p, axis=-1, keepdims=True)
    if valid is not None:
        denom = jnp.where(denom > 0.0, denom, 1.0)                 # masked rows stay exactly 0
    w = p / denom                                                  # exact divide (user-visible)

    # ---- attention output: zero-fill padded lanes, dense (TB, NPL) store ----
    if npl != np8:
        attn_ref[...] = jnp.zeros((tb, npl), f32)
        attn_ref[:, :np8] = w
    else:
        attn_ref[...] = w

    # ---- context: average raw values first (VPU+XLU), project once (one MXU matmul) ----
    u = jnp.sum(w[:, :, None] * vals, axis=1)                      # (TB, Dk)
    wsum = jnp.sum(w, axis=-1, keepdims=True)                      # (TB, 1): 1, or 0 if masked
    ctx_ref[...] = (jnp.dot(u, wv_ref[...], preferred_element_type=f32)
                    + wsum * bv_ref[...])                          # (TB, HP)


def graph_attention_layer(query, keys, values, Wq, bq, Wk, bk, Wv, bv,
                          relevance_mask=None, *, block_b=None):
    f32 = jnp.float32
    B, Dq = query.shape
    _, N, Dk = keys.shape
    H = Wq.shape[0]
    scale = float(H) ** (-0.5)

    Np8 = _round_up(max(N, 1), _SUBLANE)     # sublane-only padding of the key axis
    HP = _round_up(H, _LANE)                 # lane-dense context output
    NPL = _round_up(max(N, 1), _LANE)        # lane-dense attention output

    # ---- trace-time algebra on the (tiny) weights only ----
    Wq32, Wk32, Wv32 = Wq.astype(f32), Wk.astype(f32), Wv.astype(f32)
    A = scale * (Wq32.T @ Wk32)                                        # (Dq, Dk)
    c = (scale * (bq.astype(f32).reshape(H) @ Wk32)).reshape(1, Dk)    # (1, Dk)
    wv_t = jnp.zeros((Dk, HP), f32).at[:, :H].set(Wv32.T)              # (Dk, HP)
    bv_p = jnp.zeros((1, HP), f32).at[0, :H].set(bv.astype(f32).reshape(H))

    # ---- inputs stay f32; pad the key axis only when N % 8 != 0 (tiny) ----
    q_in = query.astype(f32)
    k_in = keys.astype(f32)
    v_in = values.astype(f32)
    mask_in = None if relevance_mask is None else relevance_mask.astype(jnp.int32)
    if Np8 != N:
        k_in = jnp.zeros((B, Np8, Dk), f32).at[:, :N].set(k_in)
        v_in = jnp.zeros((B, Np8, Dk), f32).at[:, :N].set(v_in)
        if mask_in is not None:
            mask_in = jnp.zeros((B, Np8), jnp.int32).at[:, :N].set(mask_in)

    if mask_in is not None:
        mask_kind = "ref"
    elif Np8 != N:
        mask_kind = "iota"
    else:
        mask_kind = "none"

    vmem_cap = _vmem_capacity_bytes()
    if block_b is None:
        TB = _default_block_b(B, Dq, Dk, Np8, HP, NPL, mask_kind == "ref", vmem_cap)
    else:
        TB = _round_up(max(int(block_b), 1), _SUBLANE)
    grid = (pl.cdiv(B, TB),)

    kernel = functools.partial(_gat_kernel, n_valid=N, mask_kind=mask_kind)

    const = lambda i: (0, 0)
    inputs = [q_in, k_in, v_in, A, c, wv_t, bv_p]
    in_specs = [
        pl.BlockSpec((TB, Dq), lambda i: (i, 0)),
        pl.BlockSpec((TB, Np8, Dk), lambda i: (i, 0, 0)),
        pl.BlockSpec((TB, Np8, Dk), lambda i: (i, 0, 0)),
        pl.BlockSpec((Dq, Dk), const),    # grid-invariant blocks: stay VMEM resident
        pl.BlockSpec((1, Dk), const),
        pl.BlockSpec((Dk, HP), const),
        pl.BlockSpec((1, HP), const),
    ]
    if mask_kind == "ref":
        inputs.append(mask_in)
        in_specs.append(pl.BlockSpec((TB, Np8), lambda i: (i, 0)))

    # 32 MiB on 64-MiB-VMEM chips (v7x-class), 64 MiB on 128-MiB chips (v5e/v6e).
    vmem_limit = int(min(max(vmem_cap // 2, 32 << 20), 64 << 20))

    ctx_p, attn_p = pl.pallas_call(
        kernel,
        grid=grid,
        in_specs=in_specs,
        out_specs=(pl.BlockSpec((TB, HP), lambda i: (i, 0)),
                   pl.BlockSpec((TB, NPL), lambda i: (i, 0))),
        out_shape=(jax.ShapeDtypeStruct((B, HP), f32),
                   jax.ShapeDtypeStruct((B, NPL), f32)),
        compiler_params=pltpu.CompilerParams(
            dimension_semantics=("parallel",),
            vmem_limit_bytes=vmem_limit),
    )(*inputs)

    return ctx_p[:, :H], attn_p[:, :N]


def _reference(query, keys, values, Wq, bq, Wk, bk, Wv, bv, mask):
    """Pure-JAX f32 reference with PyTorch semantics (softmax + nan_to_num(0.0))."""
    q = query @ Wq.T + bq
    k = keys @ Wk.T + bk
    v = values @ Wv.T + bv
    scale = Wq.shape[0] ** (-0.5)
    scores = jnp.einsum('bh,bnh->bn', q, k) * scale
    scores = jnp.where(mask > 0, scores, -jnp.inf)
    m = jnp.max(scores, axis=-1, keepdims=True)
    m_safe = jnp.where(jnp.isfinite(m), m, 0.0)
    p = jnp.where(mask > 0, jnp.exp(scores - m_safe), 0.0)
    denom = jnp.sum(p, axis=-1, keepdims=True)
    w = jnp.where(denom > 0.0, p / denom, 0.0)
    ctx = jnp.einsum('bn,bnh->bh', w, v)
    return ctx, w


if __name__ == "__main__":
    # Small shapes: batch=16, num_keys=16, query_dim=32, key_dim=32, hidden=32
    B, N, Dq, Dk, H = 16, 16, 32, 32, 32
    key = jax.random.PRNGKey(0)
    ks = jax.random.split(key, 10)

    query = jax.random.normal(ks[0], (B, Dq), dtype=jnp.float32)
    keys = jax.random.normal(ks[1], (B, N, Dk), dtype=jnp.float32)
    values = jax.random.normal(ks[2], (B, N, Dk), dtype=jnp.float32)

    # Deterministic param init (PyTorch Linear-style uniform +-1/sqrt(fan_in))
    def lin_init(kw, kb, out_dim, in_dim):
        bound = 1.0 / (in_dim ** 0.5)
        W = jax.random.uniform(kw, (out_dim, in_dim), jnp.float32, -bound, bound)
        b = jax.random.uniform(kb, (out_dim,), jnp.float32, -bound, bound)
        return W, b

    Wq, bq = lin_init(ks[3], ks[4], H, Dq)
    Wk, bk = lin_init(ks[5], ks[6], H, Dk)
    Wv, bv = lin_init(ks[7], ks[8], H, Dk)

    # Relevance mask: most rows keep >=1 valid key; row 3 fully masked
    # (exercises the nan_to_num(0.0) -> all-zero-weights path).
    mask = (jax.random.uniform(ks[9], (B, N)) > 0.3).astype(jnp.int32)
    mask = mask.at[:, 0].set(1)
    mask = mask.at[3, :].set(0)

    # Masked call; block_b=8 -> 2 grid steps (exercises pipelining / parallel axis).
    ctx, attn = graph_attention_layer(query, keys, values,
                                      Wq, bq, Wk, bk, Wv, bv,
                                      relevance_mask=mask, block_b=8)
    jax.block_until_ready((ctx, attn))

    ctx_ref, attn_ref = _reference(query, keys, values, Wq, bq, Wk, bk, Wv, bv, mask)
    assert ctx.shape == (B, H) and attn.shape == (B, N)
    assert jnp.allclose(ctx, ctx_ref, atol=2e-3, rtol=2e-3), \
        float(jnp.max(jnp.abs(ctx - ctx_ref)))
    assert jnp.allclose(attn, attn_ref, atol=2e-3, rtol=2e-3), \
        float(jnp.max(jnp.abs(attn - attn_ref)))
    # Fully-masked row -> all-zero weights and context (nan_to_num(0.0) semantics).
    assert float(jnp.max(jnp.abs(attn[3]))) == 0.0
    assert float(jnp.max(jnp.abs(ctx[3]))) == 0.0

    # Unmasked call (relevance_mask=None path, default VMEM-derived batch tile).
    ctx2, attn2 = graph_attention_layer(query, keys, values,
                                        Wq, bq, Wk, bk, Wv, bv,
                                        relevance_mask=None)
    jax.block_until_ready((ctx2, attn2))
    ones = jnp.ones((B, N), jnp.int32)
    ctx2_ref, attn2_ref = _reference(query, keys, values, Wq, bq, Wk, bk, Wv, bv, ones)
    assert jnp.allclose(ctx2, ctx2_ref, atol=2e-3, rtol=2e-3)
    assert jnp.allclose(attn2, attn2_ref, atol=2e-3, rtol=2e-3)

    print("KERNEL_OK")
</pallas_src>

<mosaic_0001>
module attributes {stable_mosaic.version = 11 : i64} {
  func.func @_gat_kernel(%arg0: i32, %arg1: memref<8x32xf32, #tpu.memory_space<vmem>>, %arg2: memref<8x16x32xf32, #tpu.memory_space<vmem>>, %arg3: memref<8x16x32xf32, #tpu.memory_space<vmem>>, %arg4: memref<32x32xf32, #tpu.memory_space<vmem>>, %arg5: memref<1x32xf32, #tpu.memory_space<vmem>>, %arg6: memref<32x128xf32, #tpu.memory_space<vmem>>, %arg7: memref<1x128xf32, #tpu.memory_space<vmem>>, %arg8: memref<8x16xi32, #tpu.memory_space<vmem>>, %arg9: memref<8x128xf32, #tpu.memory_space<vmem>>, %arg10: memref<8x128xf32, #tpu.memory_space<vmem>>) attributes {dimension_semantics = [#tpu.dimension_semantics<parallel>], iteration_bounds = array<i64: 2>, scalar_prefetch = 0 : i64, scratch_operands = 0 : i64, tpu.core_type = #tpu.core_type<tc>, window_params = [{transform_indices = @transform_0, window_bounds = array<i64: 8, 32>}, {transform_indices = @transform_1, window_bounds = array<i64: 8, 16, 32>}, {transform_indices = @transform_2, window_bounds = array<i64: 8, 16, 32>}, {pipeline_mode = #tpu.pipeline_mode<synchronous>, transform_indices = @transform_3, window_bounds = array<i64: 32, 32>}, {pipeline_mode = #tpu.pipeline_mode<synchronous>, transform_indices = @transform_4, window_bounds = array<i64: 1, 32>}, {pipeline_mode = #tpu.pipeline_mode<synchronous>, transform_indices = @transform_5, window_bounds = array<i64: 32, 128>}, {pipeline_mode = #tpu.pipeline_mode<synchronous>, transform_indices = @transform_6, window_bounds = array<i64: 1, 128>}, {transform_indices = @transform_7, window_bounds = array<i64: 8, 16>}, {transform_indices = @transform_8, window_bounds = array<i64: 8, 128>}, {transform_indices = @transform_9, window_bounds = array<i64: 8, 128>}]} {
    %c0 = arith.constant 0 : index
    %c0_0 = arith.constant 0 : index
    %c0_1 = arith.constant 0 : index
    %0 = vector.load %arg2[%c0, %c0_0, %c0_1] : memref<8x16x32xf32, #tpu.memory_space<vmem>>, vector<8x16x32xf32>
    %c0_2 = arith.constant 0 : index
    %c0_3 = arith.constant 0 : index
    %c0_4 = arith.constant 0 : index
    %1 = vector.load %arg3[%c0_2, %c0_3, %c0_4] : memref<8x16x32xf32, #tpu.memory_space<vmem>>, vector<8x16x32xf32>
    %c0_5 = arith.constant 0 : index
    %c0_6 = arith.constant 0 : index
    %2 = vector.load %arg1[%c0_5, %c0_6] : memref<8x32xf32, #tpu.memory_space<vmem>>, vector<8x32xf32>
    %c0_7 = arith.constant 0 : index
    %c0_8 = arith.constant 0 : index
    %3 = vector.load %arg4[%c0_7, %c0_8] : memref<32x32xf32, #tpu.memory_space<vmem>>, vector<32x32xf32>
    %cst = arith.constant dense<0.000000e+00> : vector<8x32xf32>
    %4 = tpu.matmul %2, %3, %cst {dimension_numbers = #tpu.dot_dimension_numbers<[1], [0], [0], [1], [0, 0, 1, 1], [], []>} : vector<8x32xf32>, vector<32x32xf32>, vector<8x32xf32> -> vector<8x32xf32>
    %c0_9 = arith.constant 0 : index
    %c0_10 = arith.constant 0 : index
    %5 = vector.load %arg5[%c0_9, %c0_10] : memref<1x32xf32, #tpu.memory_space<vmem>>, vector<1x32xf32>
    %6 = vector.broadcast %5 : vector<1x32xf32> to vector<8x32xf32>
    %7 = arith.addf %4, %6 : vector<8x32xf32>
    %8 = vector.shape_cast %7 : vector<8x32xf32> to vector<8x1x32xf32>
    %9 = vector.broadcast %8 : vector<8x1x32xf32> to vector<8x16x32xf32>
    %10 = arith.mulf %9, %0 : vector<8x16x32xf32>
    %cst_11 = arith.constant dense<0.000000e+00> : vector<8x16xf32>
    %11 = vector.multi_reduction <add>, %10, %cst_11 [2] : vector<8x16x32xf32> to vector<8x16xf32>
    %c0_12 = arith.constant 0 : index
    %c0_13 = arith.constant 0 : index
    %12 = vector.load %arg8[%c0_12, %c0_13] : memref<8x16xi32, #tpu.memory_space<vmem>>, vector<8x16xi32>
    %c0_i32 = arith.constant 0 : i32
    %13 = vector.broadcast %c0_i32 : i32 to vector<8x16xi32>
    %14 = arith.cmpi ne, %12, %13 : vector<8x16xi32>
    %cst_14 = arith.constant -1.000000e+30 : f32
    %15 = vector.broadcast %cst_14 : f32 to vector<8x16xf32>
    %16 = arith.select %14, %11, %15 : vector<8x16xi1>, vector<8x16xf32>
    %cst_15 = arith.constant dense<0xFF800000> : vector<8xf32>
    %17 = vector.multi_reduction <maximumf>, %16, %cst_15 [1] : vector<8x16xf32> to vector<8xf32>
    %18 = vector.shape_cast %17 : vector<8xf32> to vector<8x1xf32>
    %19 = vector.broadcast %18 : vector<8x1xf32> to vector<8x16xf32>
    %20 = arith.subf %16, %19 : vector<8x16xf32>
    %21 = math.exp %20 : vector<8x16xf32>
    %cst_16 = arith.constant 0.000000e+00 : f32
    %22 = vector.broadcast %cst_16 : f32 to vector<8x16xf32>
    %23 = arith.select %14, %21, %22 : vector<8x16xi1>, vector<8x16xf32>
    %cst_17 = arith.constant dense<0.000000e+00> : vector<8xf32>
    %24 = vector.multi_reduction <add>, %23, %cst_17 [1] : vector<8x16xf32> to vector<8xf32>
    %25 = vector.shape_cast %24 : vector<8xf32> to vector<8x1xf32>
    %cst_18 = arith.constant 0.000000e+00 : f32
    %26 = vector.broadcast %cst_18 : f32 to vector<8x1xf32>
    %27 = arith.cmpf ogt, %25, %26 : vector<8x1xf32>
    %cst_19 = arith.constant 1.000000e+00 : f32
    %28 = vector.broadcast %cst_19 : f32 to vector<8x1xf32>
    %29 = arith.select %27, %25, %28 : vector<8x1xi1>, vector<8x1xf32>
    %30 = vector.broadcast %29 : vector<8x1xf32> to vector<8x16xf32>
    %31 = arith.divf %23, %30 : vector<8x16xf32>
    %cst_20 = arith.constant 0.000000e+00 : f32
    %32 = vector.broadcast %cst_20 : f32 to vector<8x128xf32>
    %c0_21 = arith.constant 0 : index
    %c0_22 = arith.constant 0 : index
    %33 = vector.load %arg10[%c0_21, %c0_22] : memref<8x128xf32, #tpu.memory_space<vmem>>, vector<8x128xf32>
    tpu.vector_store %arg10[%c0_21, %c0_22], %32 {strides = array<i32>} : memref<8x128xf32, #tpu.memory_space<vmem>>, vector<8x128xf32>,
    %c0_23 = arith.constant 0 : index
    %c0_24 = arith.constant 0 : index
    %34 = vector.load %arg10[%c0_23, %c0_24] : memref<8x128xf32, #tpu.memory_space<vmem>>, vector<8x16xf32>
    tpu.vector_store %arg10[%c0_23, %c0_24], %31 {strides = array<i32>} : memref<8x128xf32, #tpu.memory_space<vmem>>, vector<8x16xf32>,
    %35 = vector.shape_cast %31 : vector<8x16xf32> to vector<8x16x1xf32>
    %36 = vector.broadcast %35 : vector<8x16x1xf32> to vector<8x16x32xf32>
    %37 = arith.mulf %36, %1 : vector<8x16x32xf32>
    %cst_25 = arith.constant dense<0.000000e+00> : vector<8x32xf32>
    %38 = vector.multi_reduction <add>, %37, %cst_25 [1] : vector<8x16x32xf32> to vector<8x32xf32>
    %cst_26 = arith.constant dense<0.000000e+00> : vector<8xf32>
    %39 = vector.multi_reduction <add>, %31, %cst_26 [1] : vector<8x16xf32> to vector<8xf32>
    %40 = vector.shape_cast %39 : vector<8xf32> to vector<8x1xf32>
    %c0_27 = arith.constant 0 : index
    %c0_28 = arith.constant 0 : index
    %41 = vector.load %arg6[%c0_27, %c0_28] : memref<32x128xf32, #tpu.memory_space<vmem>>, vector<32x128xf32>
    %cst_29 = arith.constant dense<0.000000e+00> : vector<8x128xf32>
    %42 = tpu.matmul %38, %41, %cst_29 {dimension_numbers = #tpu.dot_dimension_numbers<[1], [0], [0], [1], [0, 0, 1, 1], [], []>} : vector<8x32xf32>, vector<32x128xf32>, vector<8x128xf32> -> vector<8x128xf32>
    %c0_30 = arith.constant 0 : index
    %c0_31 = arith.constant 0 : index
    %43 = vector.load %arg7[%c0_30, %c0_31] : memref<1x128xf32, #tpu.memory_space<vmem>>, vector<1x128xf32>
    %44 = vector.broadcast %40 : vector<8x1xf32> to vector<8x128xf32>
    %45 = vector.broadcast %43 : vector<1x128xf32> to vector<8x128xf32>
    %46 = arith.mulf %44, %45 : vector<8x128xf32>
    %47 = arith.addf %42, %46 : vector<8x128xf32>
    %c0_32 = arith.constant 0 : index
    %c0_33 = arith.constant 0 : index
    %48 = vector.load %arg9[%c0_32, %c0_33] : memref<8x128xf32, #tpu.memory_space<vmem>>, vector<8x128xf32>
    tpu.vector_store %arg9[%c0_32, %c0_33], %47 {strides = array<i32>} : memref<8x128xf32, #tpu.memory_space<vmem>>, vector<8x128xf32>,
    return
  }
  func.func @transform_0(%arg0: i32) -> (i32, i32) {
    %c0_i32 = arith.constant 0 : i32
    %c0_i32_0 = arith.constant 0 : i32
    return %arg0, %c0_i32 : i32, i32
  }
  func.func @transform_1(%arg0: i32) -> (i32, i32, i32) {
    %c0_i32 = arith.constant 0 : i32
    %c0_i32_0 = arith.constant 0 : i32
    %c0_i32_1 = arith.constant 0 : i32
    return %arg0, %c0_i32, %c0_i32_0 : i32, i32, i32
  }
  func.func @transform_2(%arg0: i32) -> (i32, i32, i32) {
    %c0_i32 = arith.constant 0 : i32
    %c0_i32_0 = arith.constant 0 : i32
    %c0_i32_1 = arith.constant 0 : i32
    return %arg0, %c0_i32, %c0_i32_0 : i32, i32, i32
  }
  func.func @transform_3(%arg0: i32) -> (i32, i32) {
    %c0_i32 = arith.constant 0 : i32
    %c0_i32_0 = arith.constant 0 : i32
    %c0_i32_1 = arith.constant 0 : i32
    return %c0_i32, %c0_i32_0 : i32, i32
  }
  func.func @transform_4(%arg0: i32) -> (i32, i32) {
    %c0_i32 = arith.constant 0 : i32
    %c0_i32_0 = arith.constant 0 : i32
    %c0_i32_1 = arith.constant 0 : i32
    return %c0_i32, %c0_i32_0 : i32, i32
  }
  func.func @transform_5(%arg0: i32) -> (i32, i32) {
    %c0_i32 = arith.constant 0 : i32
    %c0_i32_0 = arith.constant 0 : i32
    %c0_i32_1 = arith.constant 0 : i32
    return %c0_i32, %c0_i32_0 : i32, i32
  }
  func.func @transform_6(%arg0: i32) -> (i32, i32) {
    %c0_i32 = arith.constant 0 : i32
    %c0_i32_0 = arith.constant 0 : i32
    %c0_i32_1 = arith.constant 0 : i32
    return %c0_i32, %c0_i32_0 : i32, i32
  }
  func.func @transform_7(%arg0: i32) -> (i32, i32) {
    %c0_i32 = arith.constant 0 : i32
    %c0_i32_0 = arith.constant 0 : i32
    return %arg0, %c0_i32 : i32, i32
  }
  func.func @transform_8(%arg0: i32) -> (i32, i32) {
    %c0_i32 = arith.constant 0 : i32
    %c0_i32_0 = arith.constant 0 : i32
    return %arg0, %c0_i32 : i32, i32
  }
  func.func @transform_9(%arg0: i32) -> (i32, i32) {
    %c0_i32 = arith.constant 0 : i32
    %c0_i32_0 = arith.constant 0 : i32
    return %arg0, %c0_i32 : i32, i32
  }
}

</mosaic_0001>

<llo_original>
// kernel: tpu_custom_call.1
$region0: #{tpu_custom_call.1}
  #allocation0 [shape = 'u32[]', space=smem, size = 0x4, offset = 0x4, fixed_abs, tag = 'smem constant byte address 0x4 - core index']
  #allocation1 [shape = 'u32[144,128]{1,0:T(1,128)}', space=vmem, size = 0x12000, scoped, tag = 'internal scratch']
  %s0 = inlined_call_operand.hbm [shape: f32[16,32], index: 0, kind: input, shape index: {}]
  %s1 = inlined_call_operand.hbm [shape: f32[16,16,32], index: 1, kind: input, shape index: {}]
  %s2 = inlined_call_operand.hbm [shape: f32[16,16,32], index: 2, kind: input, shape index: {}]
  %s3 = inlined_call_operand.hbm [shape: f32[32,32], index: 3, kind: input, shape index: {}]
  %s4 = inlined_call_operand.vmem [shape: f32[1,32], index: 4, kind: input, shape index: {}]
  %s5 = inlined_call_operand.hbm [shape: f32[32,128], index: 5, kind: input, shape index: {}]
  %s6 = inlined_call_operand.vmem [shape: f32[1,128], index: 6, kind: input, shape index: {}]
  %s7 = inlined_call_operand.hbm [shape: s32[16,16], index: 7, kind: input, shape index: {}]
  %s8 = inlined_call_operand.hbm [shape: f32[16,128], index: 8, kind: output, shape index: {0}]
  %s9 = inlined_call_operand.hbm [shape: f32[16,128], index: 9, kind: output, shape index: {1}]
  %10 = xla_tuple %s8, %s9
  %s11 = sld [smem:[#allocation0]]
  $region97: #{tpu_custom_call.1} parent=0
    _
  %s13 = ssub.s32 1, %s11
  %s14 = scalar_select 0, %s13, %s11
  $region1: #{tpu_custom_call.1} parent=0
    #allocation2 [shape = 'u8[8192]{0}', space=vmem, size = 0x2000, scoped, tag = 'input window, operand 0']
    #allocation3 [shape = 's32[2]{0}', space=sflag, size = 0x8, scoped, tag = 'scoped memory for tpu_custom_call.1']
    #allocation4 [shape = 's32[2]{0}', space=sflag, size = 0x8, scoped, tag = 'scoped memory for tpu_custom_call.1']
    #allocation5 [shape = 'u8[131072]{0}', space=vmem, size = 0x20000, scoped, tag = 'input window, operand 1']
    #allocation6 [shape = 's32[2]{0}', space=sflag, size = 0x8, scoped, tag = 'scoped memory for tpu_custom_call.1']
    #allocation7 [shape = 'u8[131072]{0}', space=vmem, size = 0x20000, scoped, tag = 'input window, operand 2']
    #allocation8 [shape = 'u8[16384]{0}', space=vmem, size = 0x4000, scoped, tag = 'input window, operand 3, single buffered']
    #allocation9 [shape = 's32[1]{0}', space=sflag, size = 0x4, scoped, tag = 'scoped memory for tpu_custom_call.1']
    #allocation10 [shape = 'u8[16384]{0}', space=vmem, size = 0x4000, scoped, tag = 'input window, operand 5, single buffered']
    #allocation11 [shape = 'u8[8192]{0}', space=vmem, size = 0x2000, scoped, tag = 'input window, operand 7']
    #allocation12 [shape = 's32[2]{0}', space=sflag, size = 0x8, scoped, tag = 'scoped memory for tpu_custom_call.1']
    #allocation13 [shape = 'u8[8192]{0}', space=vmem, size = 0x2000, scoped, tag = 'output window, operand 0']
    #allocation14 [shape = 'u8[8192]{0}', space=vmem, size = 0x2000, scoped, tag = 'output window, operand 1']
    #allocation15 [shape = 's32[2]{0}', space=sflag, size = 0x8, scoped, tag = 'scoped memory for tpu_custom_call.1']
    %15 = vsyncpa [#allocation3], 0
    %s16 = scalar_lea.sflag [#allocation3], 1
    %17 = vsyncpa %s16, 0
    %18 = vsyncpa [#allocation6], 0
    %s19 = scalar_lea.sflag [#allocation6], 1
    %20 = vsyncpa %s19, 0
    %21 = vsyncpa [#allocation9], 0
    %22 = vsyncpa [#allocation12], 0
    %s23 = scalar_lea.sflag [#allocation12], 1
    %24 = vsyncpa %s23, 0
    %25 = vsyncpa [#allocation4], 0
    %s26 = scalar_lea.sflag [#allocation4], 1
    %27 = vsyncpa %s26, 0
    %28 = vsyncpa [#allocation15], 0
    %s29 = scalar_lea.sflag [#allocation15], 1
    %30 = vsyncpa %s29, 0
    loop: start=0, step=1, limit=4
    $region2: #{tpu_custom_call.1} parent=1 // loop_pre_header
      _
    $region3: #{tpu_custom_call.1} parent=1 // loop_header
      %s32 = sphi 0, %s36
      %p33 = scmp.ge.s32.totalorder %s32, 4
      %s42 = sphi 0, %s44
      %s45 = sphi 0, %s42
      %s46 = sphi 0, %s45
      %s62 = sphi 0, %s46
      %s68 = sphi 0, %s70
      %s71 = sphi 0, %s68
      %s72 = sphi 0, %s71
      %s88 = sphi 0, %s72
      %s94 = sphi 0, %s96
      %s97 = sphi 0, %s94
      %s98 = sphi 0, %s97
      %s114 = sphi 0, %s98
      %s118 = sphi 0, %s118
      %s120 = sphi 0, %s118
      %s121 = sphi 0, %s120
      %s135 = sphi 0, %s121
      %s139 = sphi 0, %s139
      %s141 = sphi 0, %s139
      %s142 = sphi 0, %s141
      %s156 = sphi 0, %s142
      %s160 = sphi 0, %s160
      %s162 = sphi 0, %s160
      %s163 = sphi 0, %s162
      %s177 = sphi 0, %s163
      %s181 = sphi 0, %s181
      %s183 = sphi 0, %s181
      %s184 = sphi 0, %s183
      %s198 = sphi 0, %s184
      %s204 = sphi 0, %s206
      %s207 = sphi 0, %s204
      %s208 = sphi 0, %s207
      %s224 = sphi 0, %s208
      %s230 = sphi 0, %s232
      %s233 = sphi 0, %s230
      %s234 = sphi 0, %s233
      %s250 = sphi 0, %s234
      %s256 = sphi 0, %s258
      %s259 = sphi 0, %s256
      %s260 = sphi 0, %s259
      %s276 = sphi 0, %s260
    $region4: #{tpu_custom_call.1} parent=1 // loop_header_branch
      %35 = sbr.rel (%p33) target = $region8
    $region5: #{tpu_custom_call.1} parent=1 // loop_body
      %s37 = ssub.s32 %s32, 1
      %s38 = ssub.s32 %s32, 2
      %s39 = sadd.s32 %s32, 1
      %s40 = ssub.s32 %s32, %s39
      %p41 = scmp.eq.s32.totalorder %s40, 0
      %s43 = sadd.s32 %s42, 1
      %s44 = scalar_select %p41, %s42, %s43
      %p47 = pneg %p41
      %p48 = scmp.eq.s32.totalorder %s32, 1
      %p49 = por %p47, %p48
      %p50 = scmp.ne.s32.totalorder %s42, %s45
      %p51 = scmp.eq.s32.totalorder %s32, 0
      %p52 = por %p50, %p51
      %p53 = scmp.ne.s32.totalorder %s42, %s45
      %p54 = scmp.eq.s32.totalorder %s37, 1
      %p55 = por %p53, %p54
      %p56 = scmp.ne.s32.totalorder %s45, %s46
      %p57 = scmp.eq.s32.totalorder %s37, 0
      %p58 = por %p56, %p57
      %p59 = scmp.ne.s32.totalorder %s45, %s46
      %p60 = scmp.eq.s32.totalorder %s38, 1
      %p61 = por %p59, %p60
      %p63 = scmp.ne.s32.totalorder %s46, %s62
      %p64 = scmp.eq.s32.totalorder %s38, 0
      %p65 = por %p63, %p64
      %s66 = ssub.s32 %s32, %s39
      %p67 = scmp.eq.s32.totalorder %s66, 0
      %s69 = sadd.s32 %s68, 1
      %s70 = scalar_select %p67, %s68, %s69
      %p73 = pneg %p67
      %p74 = scmp.eq.s32.totalorder %s32, 1
      %p75 = por %p73, %p74
      %p76 = scmp.ne.s32.totalorder %s68, %s71
      %p77 = scmp.eq.s32.totalorder %s32, 0
      %p78 = por %p76, %p77
      %p79 = scmp.ne.s32.totalorder %s68, %s71
      %p80 = scmp.eq.s32.totalorder %s37, 1
      %p81 = por %p79, %p80
      %p82 = scmp.ne.s32.totalorder %s71, %s72
      %p83 = scmp.eq.s32.totalorder %s37, 0
      %p84 = por %p82, %p83
      %p85 = scmp.ne.s32.totalorder %s71, %s72
      %p86 = scmp.eq.s32.totalorder %s38, 1
      %p87 = por %p85, %p86
      %p89 = scmp.ne.s32.totalorder %s72, %s88
      %p90 = scmp.eq.s32.totalorder %s38, 0
      %p91 = por %p89, %p90
      %s92 = ssub.s32 %s32, %s39
      %p93 = scmp.eq.s32.totalorder %s92, 0
      %s95 = sadd.s32 %s94, 1
      %s96 = scalar_select %p93, %s94, %s95
      %p99 = pneg %p93
      %p100 = scmp.eq.s32.totalorder %s32, 1
      %p101 = por %p99, %p100
      %p102 = scmp.ne.s32.totalorder %s94, %s97
      %p103 = scmp.eq.s32.totalorder %s32, 0
      %p104 = por %p102, %p103
      %p105 = scmp.ne.s32.totalorder %s94, %s97
      %p106 = scmp.eq.s32.totalorder %s37, 1
      %p107 = por %p105, %p106
      %p108 = scmp.ne.s32.totalorder %s97, %s98
      %p109 = scmp.eq.s32.totalorder %s37, 0
      %p110 = por %p108, %p109
      %p111 = scmp.ne.s32.totalorder %s97, %s98
      %p112 = scmp.eq.s32.totalorder %s38, 1
      %p113 = por %p111, %p112
      %p115 = scmp.ne.s32.totalorder %s98, %s114
      %p116 = scmp.eq.s32.totalorder %s38, 0
      %p117 = por %p115, %p116
      %s119 = sadd.s32 %s118, 1
      %p122 = scmp.eq.s32.totalorder %s32, 1
      %p123 = scmp.ne.s32.totalorder %s118, %s120
      %p124 = scmp.eq.s32.totalorder %s32, 0
      %p125 = por %p123, %p124
      %p126 = scmp.ne.s32.totalorder %s118, %s120
      %p127 = scmp.eq.s32.totalorder %s37, 1
      %p128 = por %p126, %p127
      %p129 = scmp.ne.s32.totalorder %s120, %s121
      %p130 = scmp.eq.s32.totalorder %s37, 0
      %p131 = por %p129, %p130
      %p132 = scmp.ne.s32.totalorder %s120, %s121
      %p133 = scmp.eq.s32.totalorder %s38, 1
      %p134 = por %p132, %p133
      %p136 = scmp.ne.s32.totalorder %s121, %s135
      %p137 = scmp.eq.s32.totalorder %s38, 0
      %p138 = por %p136, %p137
      %s140 = sadd.s32 %s139, 1
      %p143 = scmp.eq.s32.totalorder %s32, 1
      %p144 = scmp.ne.s32.totalorder %s139, %s141
      %p145 = scmp.eq.s32.totalorder %s32, 0
      %p146 = por %p144, %p145
      %p147 = scmp.ne.s32.totalorder %s139, %s141
      %p148 = scmp.eq.s32.totalorder %s37, 1
      %p149 = por %p147, %p148
      %p150 = scmp.ne.s32.totalorder %s141, %s142
      %p151 = scmp.eq.s32.totalorder %s37, 0
      %p152 = por %p150, %p151
      %p153 = scmp.ne.s32.totalorder %s141, %s142
      %p154 = scmp.eq.s32.totalorder %s38, 1
      %p155 = por %p153, %p154
      %p157 = scmp.ne.s32.totalorder %s142, %s156
      %p158 = scmp.eq.s32.totalorder %s38, 0
      %p159 = por %p157, %p158
      %s161 = sadd.s32 %s160, 1
      %p164 = scmp.eq.s32.totalorder %s32, 1
      %p165 = scmp.ne.s32.totalorder %s160, %s162
      %p166 = scmp.eq.s32.totalorder %s32, 0
      %p167 = por %p165, %p166
      %p168 = scmp.ne.s32.totalorder %s160, %s162
      %p169 = scmp.eq.s32.totalorder %s37, 1
      %p170 = por %p168, %p169
      %p171 = scmp.ne.s32.totalorder %s162, %s163
      %p172 = scmp.eq.s32.totalorder %s37, 0
      %p173 = por %p171, %p172
      %p174 = scmp.ne.s32.totalorder %s162, %s163
      %p175 = scmp.eq.s32.totalorder %s38, 1
      %p176 = por %p174, %p175
      %p178 = scmp.ne.s32.totalorder %s163, %s177
      %p179 = scmp.eq.s32.totalorder %s38, 0
      %p180 = por %p178, %p179
      %s182 = sadd.s32 %s181, 1
      %p185 = scmp.eq.s32.totalorder %s32, 1
      %p186 = scmp.ne.s32.totalorder %s181, %s183
      %p187 = scmp.eq.s32.totalorder %s32, 0
      %p188 = por %p186, %p187
      %p189 = scmp.ne.s32.totalorder %s181, %s183
      %p190 = scmp.eq.s32.totalorder %s37, 1
      %p191 = por %p189, %p190
      %p192 = scmp.ne.s32.totalorder %s183, %s184
      %p193 = scmp.eq.s32.totalorder %s37, 0
      %p194 = por %p192, %p193
      %p195 = scmp.ne.s32.totalorder %s183, %s184
      %p196 = scmp.eq.s32.totalorder %s38, 1
      %p197 = por %p195, %p196
      %p199 = scmp.ne.s32.totalorder %s184, %s198
      %p200 = scmp.eq.s32.totalorder %s38, 0
      %p201 = por %p199, %p200
      %s202 = ssub.s32 %s32, %s39
      %p203 = scmp.eq.s32.totalorder %s202, 0
      %s205 = sadd.s32 %s204, 1
      %s206 = scalar_select %p203, %s204, %s205
      %p209 = pneg %p203
      %p210 = scmp.eq.s32.totalorder %s32, 1
      %p211 = por %p209, %p210
      %p212 = scmp.ne.s32.totalorder %s204, %s207
      %p213 = scmp.eq.s32.totalorder %s32, 0
      %p214 = por %p212, %p213
      %p215 = scmp.ne.s32.totalorder %s204, %s207
      %p216 = scmp.eq.s32.totalorder %s37, 1
      %p217 = por %p215, %p216
      %p218 = scmp.ne.s32.totalorder %s207, %s208
      %p219 = scmp.eq.s32.totalorder %s37, 0
      %p220 = por %p218, %p219
      %p221 = scmp.ne.s32.totalorder %s207, %s208
      %p222 = scmp.eq.s32.totalorder %s38, 1
      %p223 = por %p221, %p222
      %p225 = scmp.ne.s32.totalorder %s208, %s224
      %p226 = scmp.eq.s32.totalorder %s38, 0
      %p227 = por %p225, %p226
      %s228 = ssub.s32 %s32, %s39
      %p229 = scmp.eq.s32.totalorder %s228, 0
      %s231 = sadd.s32 %s230, 1
      %s232 = scalar_select %p229, %s230, %s231
      %p235 = pneg %p229
      %p236 = scmp.eq.s32.totalorder %s32, 1
      %p237 = por %p235, %p236
      %p238 = scmp.ne.s32.totalorder %s230, %s233
      %p239 = scmp.eq.s32.totalorder %s32, 0
      %p240 = por %p238, %p239
      %p241 = scmp.ne.s32.totalorder %s230, %s233
      %p242 = scmp.eq.s32.totalorder %s37, 1
      %p243 = por %p241, %p242
      %p244 = scmp.ne.s32.totalorder %s233, %s234
      %p245 = scmp.eq.s32.totalorder %s37, 0
      %p246 = por %p244, %p245
      %p247 = scmp.ne.s32.totalorder %s233, %s234
      %p248 = scmp.eq.s32.totalorder %s38, 1
      %p249 = por %p247, %p248
      %p251 = scmp.ne.s32.totalorder %s234, %s250
      %p252 = scmp.eq.s32.totalorder %s38, 0
      %p253 = por %p251, %p252
      %s254 = ssub.s32 %s32, %s39
      %p255 = scmp.eq.s32.totalorder %s254, 0
      %s257 = sadd.s32 %s256, 1
      %s258 = scalar_select %p255, %s256, %s257
      %p261 = pneg %p255
      %p262 = scmp.eq.s32.totalorder %s32, 1
      %p263 = por %p261, %p262
      %p264 = scmp.ne.s32.totalorder %s256, %s259
      %p265 = scmp.eq.s32.totalorder %s32, 0
      %p266 = por %p264, %p265
      %p267 = scmp.ne.s32.totalorder %s256, %s259
      %p268 = scmp.eq.s32.totalorder %s37, 1
      %p269 = por %p267, %p268
      %p270 = scmp.ne.s32.totalorder %s259, %s260
      %p271 = scmp.eq.s32.totalorder %s37, 0
      %p272 = por %p270, %p271
      %p273 = scmp.ne.s32.totalorder %s259, %s260
      %p274 = scmp.eq.s32.totalorder %s38, 1
      %p275 = por %p273, %p274
      %p277 = scmp.ne.s32.totalorder %s260, %s276
      %p278 = scmp.eq.s32.totalorder %s38, 0
      %p279 = por %p277, %p278
      %p280 = scmp.le.s32.totalorder 1, %s32
      %p281 = scmp.lt.s32.totalorder %s32, 3
      %p282 = pnand %p280, %p281
      %p283 = pneg %p282
      // Predicated region
      $region9: #{tpu_custom_call.1} parent=5 // pred_check
        _
      $region10: #{tpu_custom_call.1} parent=5 // pred_check_branch
        %285 = sbr.rel (%p282) target = $region12
      $region11: #{tpu_custom_call.1} parent=5 // pred_region
        %s286 = ssub.s32 %s32, 1
        // Predicated region
        $region13: #{tpu_custom_call.1} parent=11 // pred_check
          %p287 = pneg %p131
        $region14: #{tpu_custom_call.1} parent=11 // pred_check_branch
          %289 = sbr.rel (%p287) target = $region16
        $region15: #{tpu_custom_call.1} parent=11 // pred_region
          %s291 = ssub.s32 512, 512
          %292 = vsyncadd [#allocation9], %s291
          %s293 = sshll.u32 [#allocation8], 4
          %s294 = int_to_ptr.vmem [resolvable:$true] %s293
          %299 = dma.hbm_to_vmem [thread:$0]  %s3, 512, %s294, [#allocation9], 128, 128, 8
        $region16: #{tpu_custom_call.1} parent=11 // pred_fallthru
          _
        // Predicated region
        $region17: #{tpu_custom_call.1} parent=11 // pred_check
          %p300 = pneg %p152
        $region18: #{tpu_custom_call.1} parent=11 // pred_check_branch
          %302 = sbr.rel (%p300) target = $region20
        $region19: #{tpu_custom_call.1} parent=11 // pred_region
          _
        $region20: #{tpu_custom_call.1} parent=11 // pred_fallthru
          _
        // Predicated region
        $region21: #{tpu_custom_call.1} parent=11 // pred_check
          %p303 = pneg %p173
        $region22: #{tpu_custom_call.1} parent=11 // pred_check_branch
          %305 = sbr.rel (%p303) target = $region24
        $region23: #{tpu_custom_call.1} parent=11 // pred_region
          %s307 = ssub.s32 512, 512
          %308 = vsyncadd [#allocation9], %s307
          %s309 = sshll.u32 [#allocation10], 4
          %s310 = int_to_ptr.vmem [resolvable:$true] %s309
          %315 = dma.hbm_to_vmem [thread:$0]  %s5, 512, %s310, [#allocation9], 128, 128, 8
        $region24: #{tpu_custom_call.1} parent=11 // pred_fallthru
          _
        // Predicated region
        $region25: #{tpu_custom_call.1} parent=11 // pred_check
          %p316 = pneg %p194
        $region26: #{tpu_custom_call.1} parent=11 // pred_check_branch
          %318 = sbr.rel (%p316) target = $region28
        $region27: #{tpu_custom_call.1} parent=11 // pred_region
          _
        $region28: #{tpu_custom_call.1} parent=11 // pred_fallthru
          _
      $region12: #{tpu_custom_call.1} parent=5 // pred_fallthru
        _
      %p319 = scmp.lt.s32.totalorder %s32, 2
      // Predicated region
      $region29: #{tpu_custom_call.1} parent=5 // pred_check
        %p320 = pneg %p319
      $region30: #{tpu_custom_call.1} parent=5 // pred_check_branch
        %322 = sbr.rel (%p320) target = $region32
      $region31: #{tpu_custom_call.1} parent=5 // pred_region
        // Predicated region
        $region33: #{tpu_custom_call.1} parent=31 // pred_check
          %p323 = pneg %p52
        $region34: #{tpu_custom_call.1} parent=31 // pred_check_branch
          %325 = sbr.rel (%p323) target = $region36
        $region35: #{tpu_custom_call.1} parent=31 // pred_region
          %s326 = sand.u32 %s42, 1
          %s327 = scalar_lea.sflag [#allocation3], %s326
          %s328 = sand.u32 %s42, 1
          %s329 = smul.addr %s328, 8
          %s330 = scalar_lea.vmem [#allocation2], %s329
          %s332 = ssub.s32 128, 128
          %333 = vsyncadd %s327, %s332
          %s334 = smul.addr %s32, 128
          %s335 = scalar_lea.hbm %s0, %s334
          %s337 = sshll.u32 %s330, 4
          %s338 = int_to_ptr.vmem [resolvable:$true] %s337
          %340 = dma.hbm_to_vmem [thread:$0]  %s335, 128, %s338, %s327
        $region36: #{tpu_custom_call.1} parent=31 // pred_fallthru
          _
        // Predicated region
        $region37: #{tpu_custom_call.1} parent=31 // pred_check
          %p341 = pneg %p78
        $region38: #{tpu_custom_call.1} parent=31 // pred_check_branch
          %343 = sbr.rel (%p341) target = $region40
        $region39: #{tpu_custom_call.1} parent=31 // pred_region
          %s344 = sand.u32 %s32, 1
          %s345 = scalar_lea.sflag [#allocation6], %s344
          %s346 = sand.u32 %s68, 1
          %s347 = smul.addr %s346, 128
          %s348 = scalar_lea.vmem [#allocation5], %s347
          %s349 = smul.u32 8, %s32
          %s351 = ssub.s32 2048, 2048
          %352 = vsyncadd %s345, %s351
          %s353 = smul.addr %s349, 2
          %s354 = smul.addr %s353, 128
          %s355 = scalar_lea.hbm %s1, %s354
          %s356 = sshll.u32 %s348, 4
          %s357 = int_to_ptr.vmem [resolvable:$true] %s356
          %362 = dma.hbm_to_vmem [thread:$0]  %s355, 2048, %s357, %s345, 128, 128, 8
        $region40: #{tpu_custom_call.1} parent=31 // pred_fallthru
          _
        // Predicated region
        $region41: #{tpu_custom_call.1} parent=31 // pred_check
          %p363 = pneg %p104
        $region42: #{tpu_custom_call.1} parent=31 // pred_check_branch
          %365 = sbr.rel (%p363) target = $region44
        $region43: #{tpu_custom_call.1} parent=31 // pred_region
          %s366 = sand.u32 %s32, 1
          %s367 = scalar_lea.sflag [#allocation6], %s366
          %s368 = sand.u32 %s94, 1
          %s369 = smul.addr %s368, 128
          %s370 = scalar_lea.vmem [#allocation7], %s369
          %s371 = smul.u32 8, %s32
          %s373 = ssub.s32 2048, 2048
          %374 = vsyncadd %s367, %s373
          %s375 = smul.addr %s371, 2
          %s376 = smul.addr %s375, 128
          %s377 = scalar_lea.hbm %s2, %s376
          %s378 = sshll.u32 %s370, 4
          %s379 = int_to_ptr.vmem [resolvable:$true] %s378
          %384 = dma.hbm_to_vmem [thread:$0]  %s377, 2048, %s379, %s367, 128, 128, 8
        $region44: #{tpu_custom_call.1} parent=31 // pred_fallthru
          _
        // Predicated region
        $region45: #{tpu_custom_call.1} parent=31 // pred_check
          %p385 = pneg %p214
        $region46: #{tpu_custom_call.1} parent=31 // pred_check_branch
          %387 = sbr.rel (%p385) target = $region48
        $region47: #{tpu_custom_call.1} parent=31 // pred_region
          %s388 = sand.u32 %s204, 1
          %s389 = scalar_lea.sflag [#allocation12], %s388
          %s390 = sand.u32 %s204, 1
          %s391 = smul.addr %s390, 8
          %s392 = scalar_lea.vmem [#allocation11], %s391
          %s394 = ssub.s32 128, 128
          %395 = vsyncadd %s389, %s394
          %s396 = smul.addr %s32, 128
          %s397 = scalar_lea.hbm %s7, %s396
          %s399 = sshll.u32 %s392, 4
          %s400 = int_to_ptr.vmem [resolvable:$true] %s399
          %402 = dma.hbm_to_vmem [thread:$0]  %s397, 128, %s400, %s389
        $region48: #{tpu_custom_call.1} parent=31 // pred_fallthru
          _
      $region32: #{tpu_custom_call.1} parent=5 // pred_fallthru
        _
      %p403 = scmp.le.s32.totalorder 1, %s32
      %p404 = scmp.lt.s32.totalorder %s32, 3
      %p405 = pnand %p403, %p404
      %p406 = pneg %p405
      // Predicated region
      $region49: #{tpu_custom_call.1} parent=5 // pred_check
        _
      $region50: #{tpu_custom_call.1} parent=5 // pred_check_branch
        %408 = sbr.rel (%p405) target = $region52
      $region51: #{tpu_custom_call.1} parent=5 // pred_region
        %s409 = ssub.s32 %s32, 1
        %s410 = sand.u32 %s45, 1
        %s411 = scalar_lea.sflag [#allocation3], %s410
        %s412 = sand.u32 %s45, 1
        %s413 = smul.addr %s412, 8
        %s414 = scalar_lea.vmem [#allocation2], %s413
        // Predicated region
        $region53: #{tpu_custom_call.1} parent=51 // pred_check
          %p415 = pneg %p58
        $region54: #{tpu_custom_call.1} parent=51 // pred_check_branch
          %417 = sbr.rel (%p415) target = $region56
        $region55: #{tpu_custom_call.1} parent=51 // pred_region
          %418 = dma.done %s411, 128
        $region56: #{tpu_custom_call.1} parent=51 // pred_fallthru
          _
        %s419 = sand.u32 %s37, 1
        %s420 = scalar_lea.sflag [#allocation6], %s419
        %s421 = sand.u32 %s71, 1
        %s422 = smul.addr %s421, 128
        %s423 = scalar_lea.vmem [#allocation5], %s422
        // Predicated region
        $region57: #{tpu_custom_call.1} parent=51 // pred_check
          %p424 = pneg %p84
        $region58: #{tpu_custom_call.1} parent=51 // pred_check_branch
          %426 = sbr.rel (%p424) target = $region60
        $region59: #{tpu_custom_call.1} parent=51 // pred_region
          %427 = dma.done %s420, 2048
        $region60: #{tpu_custom_call.1} parent=51 // pred_fallthru
          _
        %s428 = sand.u32 %s37, 1
        %s429 = scalar_lea.sflag [#allocation6], %s428
        %s430 = sand.u32 %s97, 1
        %s431 = smul.addr %s430, 128
        %s432 = scalar_lea.vmem [#allocation7], %s431
        // Predicated region
        $region61: #{tpu_custom_call.1} parent=51 // pred_check
          %p433 = pneg %p110
        $region62: #{tpu_custom_call.1} parent=51 // pred_check_branch
          %435 = sbr.rel (%p433) target = $region64
        $region63: #{tpu_custom_call.1} parent=51 // pred_region
          %436 = dma.done %s429, 2048
        $region64: #{tpu_custom_call.1} parent=51 // pred_fallthru
          _
        // Predicated region
        $region65: #{tpu_custom_call.1} parent=51 // pred_check
          %p437 = pneg %p131
        $region66: #{tpu_custom_call.1} parent=51 // pred_check_branch
          %439 = sbr.rel (%p437) target = $region68
        $region67: #{tpu_custom_call.1} parent=51 // pred_region
          %440 = dma.done [#allocation9], 512
        $region68: #{tpu_custom_call.1} parent=51 // pred_fallthru
          _
        // Predicated region
        $region69: #{tpu_custom_call.1} parent=51 // pred_check
          %p441 = pneg %p173
        $region70: #{tpu_custom_call.1} parent=51 // pred_check_branch
          %443 = sbr.rel (%p441) target = $region72
        $region71: #{tpu_custom_call.1} parent=51 // pred_region
          %444 = dma.done [#allocation9], 512
        $region72: #{tpu_custom_call.1} parent=51 // pred_fallthru
          _
        %s445 = sand.u32 %s207, 1
        %s446 = scalar_lea.sflag [#allocation12], %s445
        %s447 = sand.u32 %s207, 1
        %s448 = smul.addr %s447, 8
        %s449 = scalar_lea.vmem [#allocation11], %s448
        // Predicated region
        $region73: #{tpu_custom_call.1} parent=51 // pred_check
          %p450 = pneg %p220
        $region74: #{tpu_custom_call.1} parent=51 // pred_check_branch
          %452 = sbr.rel (%p450) target = $region76
        $region75: #{tpu_custom_call.1} parent=51 // pred_region
          %453 = dma.done %s446, 128
        $region76: #{tpu_custom_call.1} parent=51 // pred_fallthru
          _
        %s454 = sand.u32 %s45, 1
        %s455 = scalar_lea.sflag [#allocation3], %s454
        %s456 = sand.u32 %s45, 1
        %s457 = smul.addr %s456, 8
        %s458 = scalar_lea.vmem [#allocation2], %s457
        %p459 = pneg %p58
        %p460 = pneg %p55
        %s461 = sand.u32 %s37, 1
        %s462 = scalar_lea.sflag [#allocation6], %s461
        %s463 = sand.u32 %s71, 1
        %s464 = smul.addr %s463, 128
        %s465 = scalar_lea.vmem [#allocation5], %s464
        %p466 = pneg %p84
        %p467 = pneg %p81
        %s468 = sand.u32 %s37, 1
        %s469 = scalar_lea.sflag [#allocation6], %s468
        %s470 = sand.u32 %s97, 1
        %s471 = smul.addr %s470, 128
        %s472 = scalar_lea.vmem [#allocation7], %s471
        %p473 = pneg %p110
        %p474 = pneg %p107
        %p475 = pneg %p131
        %p476 = pneg %p128
        %p477 = pneg %p152
        %p478 = pneg %p149
        %p479 = pneg %p173
        %p480 = pneg %p170
        %p481 = pneg %p194
        %p482 = pneg %p191
        %s483 = sand.u32 %s207, 1
        %s484 = scalar_lea.sflag [#allocation12], %s483
        %s485 = sand.u32 %s207, 1
        %s486 = smul.addr %s485, 8
        %s487 = scalar_lea.vmem [#allocation11], %s486
        %p488 = pneg %p220
        %p489 = pneg %p217
        %p490 = pneg %p246
        %p491 = pneg %p243
        %s492 = sand.u32 %s233, 1
        %s493 = scalar_lea.sflag [#allocation4], %s492
        %s494 = sand.u32 %s233, 1
        %s495 = smul.addr %s494, 8
        %s496 = scalar_lea.vmem [#allocation13], %s495
        %p497 = pneg %p272
        %p498 = pneg %p269
        %s499 = sand.u32 %s259, 1
        %s500 = scalar_lea.sflag [#allocation15], %s499
        %s501 = sand.u32 %s259, 1
        %s502 = smul.addr %s501, 8
        %s503 = scalar_lea.vmem [#allocation14], %s502
        %s504 = smul.u32 8, %s37
        %s505 = smul.u32 8, %s37
        %v506 = vld [vmem:[%s423] sm:$0xff]
        %v507 = vld [vmem:[%s423 + $0x8] sm:$0xff]
        %v508 = vld [vmem:[%s423 + $0x10] sm:$0xff]
        %v509 = vld [vmem:[%s423 + $0x18] sm:$0xff]
        %v510 = vld [vmem:[%s423 + $0x20] sm:$0xff]
        %v511 = vld [vmem:[%s423 + $0x28] sm:$0xff]
        %v512 = vld [vmem:[%s423 + $0x30] sm:$0xff]
        %v513 = vld [vmem:[%s423 + $0x38] sm:$0xff]
        %v514 = vld [vmem:[%s423 + $0x40] sm:$0xff]
        %v515 = vld [vmem:[%s423 + $0x48] sm:$0xff]
        %v516 = vld [vmem:[%s423 + $0x50] sm:$0xff]
        %v517 = vld [vmem:[%s423 + $0x58] sm:$0xff]
        %v518 = vld [vmem:[%s423 + $0x60] sm:$0xff]
        %v519 = vld [vmem:[%s423 + $0x68] sm:$0xff]
        %v520 = vld [vmem:[%s423 + $0x70] sm:$0xff]
        %v521 = vld [vmem:[%s423 + $0x78] sm:$0xff]
        %v522 = vld [vmem:[%s432] sm:$0xff]
        %v523 = vld [vmem:[%s432 + $0x8] sm:$0xff]
        %v524 = vld [vmem:[%s432 + $0x10] sm:$0xff]
        %v525 = vld [vmem:[%s432 + $0x18] sm:$0xff]
        %v526 = vld [vmem:[%s432 + $0x20] sm:$0xff]
        %v527 = vld [vmem:[%s432 + $0x28] sm:$0xff]
        %v528 = vld [vmem:[%s432 + $0x30] sm:$0xff]
        %v529 = vld [vmem:[%s432 + $0x38] sm:$0xff]
        %v530 = vld [vmem:[%s432 + $0x40] sm:$0xff]
        %v531 = vld [vmem:[%s432 + $0x48] sm:$0xff]
        %v532 = vld [vmem:[%s432 + $0x50] sm:$0xff]
        %v533 = vld [vmem:[%s432 + $0x58] sm:$0xff]
        %v534 = vld [vmem:[%s432 + $0x60] sm:$0xff]
        %v535 = vld [vmem:[%s432 + $0x68] sm:$0xff]
        %v536 = vld [vmem:[%s432 + $0x70] sm:$0xff]
        %v537 = vld [vmem:[%s432 + $0x78] sm:$0xff]
        %v538 = vld [vmem:[%s414] sm:$0xff]
        %v539 = vld [vmem:[#allocation8] sm:$0xff]
        %v540 = vld [vmem:[#allocation8 + $0x8] sm:$0xff]
        %v541 = vld [vmem:[#allocation8 + $0x10] sm:$0xff]
        %v542 = vld [vmem:[#allocation8 + $0x18] sm:$0xff]
        %v543 = vld [vmem:[%s4] sm:$0x1]
        %v545 = vlaneseq
        %v546 = vshrl.u32 %v545, 7
        %v547 = vsub.s32 0, %v546
        %v548 = vrot.slane %v543, %v547
        %vm550 = vcmask 261120
        %v552 = vsel %vm550, %v538, 0
        %554 = vmatprep.subr.mxu0 0.0
        %555 = vmatpush1.msra.mxu0 0.0
        %556 = vmatprep.subr.mxu0 0.0
        %557 = vmatpush1.msra.mxu0 0.0
        %558 = vmatprep.subr.mxu0 0.0
        %559 = vmatpush1.msra.mxu0 0.0
        %560 = vmatprep.subr.mxu0 0.0
        %561 = vmatpush1.msra.mxu0 0.0
        %562 = vmatprep.subr.mxu0 0.0
        %563 = vmatpush1.msra.mxu0 0.0
        %564 = vmatprep.subr.mxu0 0.0
        %565 = vmatpush1.msra.mxu0 0.0
        %566 = vmatprep.subr.mxu0 0.0
        %567 = vmatpush1.msra.mxu0 0.0
        %568 = vmatprep.subr.mxu0 0.0
        %569 = vmatpush1.msra.mxu0 0.0
        %570 = vmatprep.subr.mxu0 0.0
        %571 = vmatpush1.msra.mxu0 0.0
        %572 = vmatprep.subr.mxu0 0.0
        %573 = vmatpush1.msra.mxu0 0.0
        %574 = vmatprep.subr.mxu0 0.0
        %575 = vmatpush1.msra.mxu0 0.0
        %576 = vmatprep.subr.mxu0 0.0
        %577 = vmatpush1.msra.mxu0 0.0
        %578 = vmatprep.subr.mxu0 0.0
        %579 = vmatpush1.msra.mxu0 %v542
        %580 = vmatprep.subr.mxu0 0.0
        %581 = vmatpush1.msra.mxu0 %v541
        %582 = vmatprep.subr.mxu0 0.0
        %583 = vmatpush1.msra.mxu0 %v540
        %584 = vmatprep.subr.mxu0 0.0
        %585 = vmatpush1.msra.mxu0 %v539
        %586 = vmatprep.subr.mxu0 0.0
        %587 = vmatpush2.msra.mxu0 0.0
        %588 = vmatprep.subr.mxu0 0.0
        %589 = vmatpush2.msra.mxu0 0.0
        %590 = vmatprep.subr.mxu0 0.0
        %591 = vmatpush2.msra.mxu0 0.0
        %592 = vmatprep.subr.mxu0 0.0
        %593 = vmatpush2.msra.mxu0 0.0
        %594 = vmatprep.subr.mxu0 0.0
        %595 = vmatpush2.msra.mxu0 0.0
        %596 = vmatprep.subr.mxu0 0.0
        %597 = vmatpush2.msra.mxu0 0.0
        %598 = vmatprep.subr.mxu0 0.0
        %599 = vmatpush2.msra.mxu0 0.0
        %600 = vmatprep.subr.mxu0 0.0
        %601 = vmatpush2.msra.mxu0 0.0
        %602 = vmatprep.subr.mxu0 0.0
        %603 = vmatpush2.msra.mxu0 0.0
        %604 = vmatprep.subr.mxu0 0.0
        %605 = vmatpush2.msra.mxu0 0.0
        %606 = vmatprep.subr.mxu0 0.0
        %607 = vmatpush2.msra.mxu0 0.0
        %608 = vmatprep.subr.mxu0 0.0
        %609 = vmatpush2.msra.mxu0 0.0
        %610 = vmatprep.subr.mxu0 0.0
        %611 = vmatpush2.msra.mxu0 0.0
        %612 = vmatprep.subr.mxu0 0.0
        %613 = vmatpush2.msra.mxu0 0.0
        %614 = vmatprep.subr.mxu0 0.0
        %615 = vmatpush2.msra.mxu0 0.0
        %616 = vmatprep.subr.mxu0 0.0
        %617 = vmatpush2.msra.mxu0 0.0
        %618 = vmatprep.mubr.f32.mxu0 0.0
        %619 = vmatmul.mubr.f32.gmra.mxu0 %v552
        %v620 = vpop.f32.mrf.mxu0
        %v621 = vadd.f32 %v548, %v620
        %v622 = vpop.f32.mrf.mxu0
        %623 = vdwg.mxu0
        %v625 = vcombine.high %v621, %v621
        %v627 = vunpack.c.l.s4 1966171168
        %v628 = vunpack.c.0.s8 %v627
        %v629 = vlaneseq
        %v630 = vshrl.u32 %v629, 7
        %v631 = vsub.s32 %v628, %v630
        %v632 = vrot.slane %v621, %v631
        %v634 = vunpack.c.l.s4 1966171168
        %v635 = vunpack.c.0.s8 %v634
        %v636 = vlaneseq
        %v637 = vshrl.u32 %v636, 7
        %v638 = vsub.s32 %v635, %v637
        %v639 = vrot.slane %v625, %v638
        %v640 = vcombine.high %v632, %v632
        %v641 = vcombine.high %v639, %v639
        %v643 = vunpack.c.l.s4 1966171168
        %v644 = vunpack.c.0.s8 %v643
        %v645 = vlaneseq
        %v646 = vshrl.u32 %v645, 7
        %v647 = vsub.s32 %v644, %v646
        %v648 = vrot.slane %v632, %v647
        %v650 = vunpack.c.l.s4 1966171168
        %v651 = vunpack.c.0.s8 %v650
        %v652 = vlaneseq
        %v653 = vshrl.u32 %v652, 7
        %v654 = vsub.s32 %v651, %v653
        %v655 = vrot.slane %v639, %v654
        %v657 = vunpack.c.l.s4 1966171168
        %v658 = vunpack.c.0.s8 %v657
        %v659 = vlaneseq
        %v660 = vshrl.u32 %v659, 7
        %v661 = vsub.s32 %v658, %v660
        %v662 = vrot.slane %v640, %v661
        %v664 = vunpack.c.l.s4 1966171168
        %v665 = vunpack.c.0.s8 %v664
        %v666 = vlaneseq
        %v667 = vshrl.u32 %v666, 7
        %v668 = vsub.s32 %v665, %v667
        %v669 = vrot.slane %v641, %v668
        %v670 = vcombine.high %v648, %v648
        %v671 = vcombine.high %v655, %v655
        %v672 = vcombine.high %v662, %v662
        %v673 = vcombine.high %v669, %v669
        %v674 = vlaneseq
        %v675 = vshrl.u32 %v674, 7
        %v676 = vsub.s32 0, %v675
        %v677 = vrot.slane %v648, %v676
        %v678 = vlaneseq
        %v679 = vshrl.u32 %v678, 7
        %v680 = vsub.s32 0, %v679
        %v681 = vrot.slane %v662, %v680
        %v682 = vlaneseq
        %v683 = vshrl.u32 %v682, 7
        %v684 = vsub.s32 0, %v683
        %v685 = vrot.slane %v670, %v684
        %v686 = vlaneseq
        %v687 = vshrl.u32 %v686, 7
        %v688 = vsub.s32 0, %v687
        %v689 = vrot.slane %v672, %v688
        %v690 = vlaneseq
        %v691 = vshrl.u32 %v690, 7
        %v692 = vsub.s32 0, %v691
        %v693 = vrot.slane %v655, %v692
        %v694 = vlaneseq
        %v695 = vshrl.u32 %v694, 7
        %v696 = vsub.s32 0, %v695
        %v697 = vrot.slane %v669, %v696
        %v698 = vlaneseq
        %v699 = vshrl.u32 %v698, 7
        %v700 = vsub.s32 0, %v699
        %v701 = vrot.slane %v671, %v700
        %v702 = vlaneseq
        %v703 = vshrl.u32 %v702, 7
        %v704 = vsub.s32 0, %v703
        %v705 = vrot.slane %v673, %v704
        %v714 = vmul.f32 %v677, %v506
        %v715 = vmul.f32 %v677, %v507
        %v716 = vmul.f32 %v681, %v508
        %v717 = vmul.f32 %v681, %v509
        %v718 = vmul.f32 %v685, %v510
        %v719 = vmul.f32 %v685, %v511
        %v720 = vmul.f32 %v689, %v512
        %v721 = vmul.f32 %v689, %v513
        %v722 = vmul.f32 %v693, %v514
        %v723 = vmul.f32 %v693, %v515
        %v724 = vmul.f32 %v697, %v516
        %v725 = vmul.f32 %v697, %v517
        %v726 = vmul.f32 %v701, %v518
        %v727 = vmul.f32 %v701, %v519
        %v728 = vmul.f32 %v705, %v520
        %v729 = vmul.f32 %v705, %v521
        %v730 = vsel %vm550, %v714, 0.0
        %731 = vadd.xlane.f32.xlu0 %v730
        %v732 = vpop.xlane.xlu0 %731
        %v733 = vsel %vm550, %v715, 0.0
        %734 = vadd.xlane.f32.xlu0 %v733
        %v735 = vpop.xlane.xlu0 %734
        %v736 = vsel %vm550, %v716, 0.0
        %737 = vadd.xlane.f32.xlu0 %v736
        %v738 = vpop.xlane.xlu0 %737
        %v739 = vsel %vm550, %v717, 0.0
        %740 = vadd.xlane.f32.xlu0 %v739
        %v741 = vpop.xlane.xlu0 %740
        %v742 = vsel %vm550, %v718, 0.0
        %743 = vadd.xlane.f32.xlu0 %v742
        %v744 = vpop.xlane.xlu0 %743
        %v745 = vsel %vm550, %v719, 0.0
        %746 = vadd.xlane.f32.xlu0 %v745
        %v747 = vpop.xlane.xlu0 %746
        %v748 = vsel %vm550, %v720, 0.0
        %749 = vadd.xlane.f32.xlu0 %v748
        %v750 = vpop.xlane.xlu0 %749
        %v751 = vsel %vm550, %v721, 0.0
        %752 = vadd.xlane.f32.xlu0 %v751
        %v753 = vpop.xlane.xlu0 %752
        %v754 = vsel %vm550, %v722, 0.0
        %755 = vadd.xlane.f32.xlu0 %v754
        %v756 = vpop.xlane.xlu0 %755
        %v757 = vsel %vm550, %v723, 0.0
        %758 = vadd.xlane.f32.xlu0 %v757
        %v759 = vpop.xlane.xlu0 %758
        %v760 = vsel %vm550, %v724, 0.0
        %761 = vadd.xlane.f32.xlu0 %v760
        %v762 = vpop.xlane.xlu0 %761
        %v763 = vsel %vm550, %v725, 0.0
        %764 = vadd.xlane.f32.xlu0 %v763
        %v765 = vpop.xlane.xlu0 %764
        %v766 = vsel %vm550, %v726, 0.0
        %767 = vadd.xlane.f32.xlu0 %v766
        %v768 = vpop.xlane.xlu0 %767
        %v769 = vsel %vm550, %v727, 0.0
        %770 = vadd.xlane.f32.xlu0 %v769
        %v771 = vpop.xlane.xlu0 %770
        %v772 = vsel %vm550, %v728, 0.0
        %773 = vadd.xlane.f32.xlu0 %v772
        %v774 = vpop.xlane.xlu0 %773
        %v775 = vsel %vm550, %v729, 0.0
        %776 = vadd.xlane.f32.xlu0 %v775
        %v777 = vpop.xlane.xlu0 %776
        %v778 = vld [vmem:[%s449] sm:$0xff]
        %vm779 = vcmp.ne.s32.totalorder %v778, 0
        %v796 = vlaneseq
        %v797 = vand.u32 %v796, 127
        %v798 = vlaneseq
        %v799 = vshrl.u32 %v798, 7
        %v800 = vsub.s32 %v797, %v799
        %v801 = vrot.slane %v732, %v800
        %v802 = vadd.s32 %v797, 4294967288
        %v803 = vlaneseq
        %v804 = vshrl.u32 %v803, 7
        %v805 = vsub.s32 %v802, %v804
        %v806 = vrot.slane %v735, %v805
        %vm807 = vcmask 130112
        %v808 = vsel %vm807, %v806, %v801
        %v809 = vlaneseq
        %v810 = vshrl.u32 %v809, 7
        %v811 = vsub.s32 %v797, %v810
        %v812 = vrot.slane %v738, %v811
        %v813 = vlaneseq
        %v814 = vshrl.u32 %v813, 7
        %v815 = vsub.s32 %v802, %v814
        %v816 = vrot.slane %v741, %v815
        %v817 = vsel %vm807, %v816, %v812
        %v818 = vlaneseq
        %v819 = vshrl.u32 %v818, 7
        %v820 = vsub.s32 %v797, %v819
        %v821 = vrot.slane %v744, %v820
        %v822 = vlaneseq
        %v823 = vshrl.u32 %v822, 7
        %v824 = vsub.s32 %v802, %v823
        %v825 = vrot.slane %v747, %v824
        %v826 = vsel %vm807, %v825, %v821
        %v827 = vlaneseq
        %v828 = vshrl.u32 %v827, 7
        %v829 = vsub.s32 %v797, %v828
        %v830 = vrot.slane %v750, %v829
        %v831 = vlaneseq
        %v832 = vshrl.u32 %v831, 7
        %v833 = vsub.s32 %v802, %v832
        %v834 = vrot.slane %v753, %v833
        %v835 = vsel %vm807, %v834, %v830
        %v836 = vlaneseq
        %v837 = vshrl.u32 %v836, 7
        %v838 = vsub.s32 %v797, %v837
        %v839 = vrot.slane %v756, %v838
        %v840 = vlaneseq
        %v841 = vshrl.u32 %v840, 7
        %v842 = vsub.s32 %v802, %v841
        %v843 = vrot.slane %v759, %v842
        %v844 = vsel %vm807, %v843, %v839
        %v845 = vlaneseq
        %v846 = vshrl.u32 %v845, 7
        %v847 = vsub.s32 %v797, %v846
        %v848 = vrot.slane %v762, %v847
        %v849 = vlaneseq
        %v850 = vshrl.u32 %v849, 7
        %v851 = vsub.s32 %v802, %v850
        %v852 = vrot.slane %v765, %v851
        %v853 = vsel %vm807, %v852, %v848
        %v854 = vlaneseq
        %v855 = vshrl.u32 %v854, 7
        %v856 = vsub.s32 %v797, %v855
        %v857 = vrot.slane %v768, %v856
        %v858 = vlaneseq
        %v859 = vshrl.u32 %v858, 7
        %v860 = vsub.s32 %v802, %v859
        %v861 = vrot.slane %v771, %v860
        %v862 = vsel %vm807, %v861, %v857
        %v863 = vlaneseq
        %v864 = vshrl.u32 %v863, 7
        %v865 = vsub.s32 %v797, %v864
        %v866 = vrot.slane %v774, %v865
        %v867 = vlaneseq
        %v868 = vshrl.u32 %v867, 7
        %v869 = vsub.s32 %v802, %v868
        %v870 = vrot.slane %v777, %v869
        %v871 = vsel %vm807, %v870, %v866
        %vm872 = vcmask 1041409
        %v873 = vsel %vm872, %v817, %v808
        %vm874 = vcmask 1042434
        %v875 = vsel %vm874, %v826, %v873
        %vm876 = vcmask 1043459
        %v877 = vsel %vm876, %v835, %v875
        %vm878 = vcmask 1044484
        %v879 = vsel %vm878, %v844, %v877
        %vm880 = vcmask 1045509
        %v881 = vsel %vm880, %v853, %v879
        %vm882 = vcmask 1046534
        %v883 = vsel %vm882, %v862, %v881
        %vm884 = vcmask 1047559
        %v885 = vsel %vm884, %v871, %v883
        %v887 = vsel %vm779, %v885, -1e+30
        %vm888 = vcmask 130048
        %v889 = vsel %vm888, %v887, -inf
        %890 = vmax.xlane.f32.xlu0 %v889
        %v891 = vpop.xlane.xlu0 %890
        %v892 = vsub.f32 %v887, %v891
        %v893 = vmul.f32 %v892, 1.442695
        %v894 = vpow.pop %v893
        %v895 = vsel %vm779, %v894, 0.0
        %v896 = vsel %vm888, %v895, 0.0
        %897 = vadd.xlane.f32.xlu0 %v896
        %v898 = vpop.xlane.xlu0 %897
        %vm899 = vcmp.gt.f32.partialorder %v898, 0.0
        %v900 = vsel %vm899, %v898, 1.0
        %v901 = vrcp.pop %v900
        %v902 = vmul.f32 %v895, %v901
        %903 = vst [vmem:[%s503] sm:$0xff] 0.0
        %904 = vst.msk [vmem:[%s503] sm:$0xff] %vm888, %v902
        %v905 = vlaneseq
        %v906 = vshrl.u32 %v905, 7
        %v907 = vsub.s32 0, %v906
        %v908 = vrot.slane %v902, %v907
        %910 = vbcast.lane.b32.xlu0 %v908, 256
        %v911 = vpop.permute.xlu0 %910
        %s913 = sor.u32 256, 8
        %914 = vbcast.lane.b32.xlu0 %v908, %s913
        %v915 = vpop.permute.xlu0 %914
        %v916 = vlaneseq
        %v917 = vshrl.u32 %v916, 7
        %v918 = vsub.s32 1, %v917
        %v919 = vrot.slane %v902, %v918
        %921 = vbcast.lane.b32.xlu0 %v919, 256
        %v922 = vpop.permute.xlu0 %921
        %s924 = sor.u32 256, 8
        %925 = vbcast.lane.b32.xlu0 %v919, %s924
        %v926 = vpop.permute.xlu0 %925
        %v927 = vlaneseq
        %v928 = vshrl.u32 %v927, 7
        %v929 = vsub.s32 2, %v928
        %v930 = vrot.slane %v902, %v929
        %932 = vbcast.lane.b32.xlu0 %v930, 256
        %v933 = vpop.permute.xlu0 %932
        %s935 = sor.u32 256, 8
        %936 = vbcast.lane.b32.xlu0 %v930, %s935
        %v937 = vpop.permute.xlu0 %936
        %v938 = vlaneseq
        %v939 = vshrl.u32 %v938, 7
        %v940 = vsub.s32 3, %v939
        %v941 = vrot.slane %v902, %v940
        %943 = vbcast.lane.b32.xlu0 %v941, 256
        %v944 = vpop.permute.xlu0 %943
        %s946 = sor.u32 256, 8
        %947 = vbcast.lane.b32.xlu0 %v941, %s946
        %v948 = vpop.permute.xlu0 %947
        %v949 = vlaneseq
        %v950 = vshrl.u32 %v949, 7
        %v951 = vsub.s32 4, %v950
        %v952 = vrot.slane %v902, %v951
        %954 = vbcast.lane.b32.xlu0 %v952, 256
        %v955 = vpop.permute.xlu0 %954
        %s957 = sor.u32 256, 8
        %958 = vbcast.lane.b32.xlu0 %v952, %s957
        %v959 = vpop.permute.xlu0 %958
        %v960 = vlaneseq
        %v961 = vshrl.u32 %v960, 7
        %v962 = vsub.s32 5, %v961
        %v963 = vrot.slane %v902, %v962
        %965 = vbcast.lane.b32.xlu0 %v963, 256
        %v966 = vpop.permute.xlu0 %965
        %s968 = sor.u32 256, 8
        %969 = vbcast.lane.b32.xlu0 %v963, %s968
        %v970 = vpop.permute.xlu0 %969
        %v971 = vlaneseq
        %v972 = vshrl.u32 %v971, 7
        %v973 = vsub.s32 6, %v972
        %v974 = vrot.slane %v902, %v973
        %976 = vbcast.lane.b32.xlu0 %v974, 256
        %v977 = vpop.permute.xlu0 %976
        %s979 = sor.u32 256, 8
        %980 = vbcast.lane.b32.xlu0 %v974, %s979
        %v981 = vpop.permute.xlu0 %980
        %v982 = vlaneseq
        %v983 = vshrl.u32 %v982, 7
        %v984 = vsub.s32 7, %v983
        %v985 = vrot.slane %v902, %v984
        %987 = vbcast.lane.b32.xlu0 %v985, 256
        %v988 = vpop.permute.xlu0 %987
        %s990 = sor.u32 256, 8
        %991 = vbcast.lane.b32.xlu0 %v985, %s990
        %v992 = vpop.permute.xlu0 %991
        %v993 = vmul.f32 %v911, %v522
        %v994 = vmul.f32 %v915, %v523
        %v995 = vmul.f32 %v922, %v524
        %v996 = vmul.f32 %v926, %v525
        %v997 = vmul.f32 %v933, %v526
        %v998 = vmul.f32 %v937, %v527
        %v999 = vmul.f32 %v944, %v528
        %v1000 = vmul.f32 %v948, %v529
        %v1001 = vmul.f32 %v955, %v530
        %v1002 = vmul.f32 %v959, %v531
        %v1003 = vmul.f32 %v966, %v532
        %v1004 = vmul.f32 %v970, %v533
        %v1005 = vmul.f32 %v977, %v534
        %v1006 = vmul.f32 %v981, %v535
        %v1007 = vmul.f32 %v988, %v536
        %v1008 = vmul.f32 %v992, %v537
        %v1009 = vsel %vm550, %v993, 0.0
        %v1010 = vsel %vm550, %v994, 0.0
        %v1011 = vadd.f32 %v1009, %v1010
        %v1012 = vrot.slane %v1011, 4
        %v1013 = vadd.f32 %v1011, %v1012
        %v1014 = vrot.slane %v1013, 2
        %v1015 = vadd.f32 %v1013, %v1014
        %v1016 = vrot.slane %v1015, 1
        %v1017 = vadd.f32 %v1015, %v1016
        %v1018 = vsel %vm550, %v995, 0.0
        %v1019 = vsel %vm550, %v996, 0.0
        %v1020 = vadd.f32 %v1018, %v1019
        %v1021 = vrot.slane %v1020, 4
        %v1022 = vadd.f32 %v1020, %v1021
        %v1023 = vrot.slane %v1022, 2
        %v1024 = vadd.f32 %v1022, %v1023
        %v1025 = vrot.slane %v1024, 1
        %v1026 = vadd.f32 %v1024, %v1025
        %v1027 = vsel %vm550, %v997, 0.0
        %v1028 = vsel %vm550, %v998, 0.0
        %v1029 = vadd.f32 %v1027, %v1028
        %v1030 = vrot.slane %v1029, 4
        %v1031 = vadd.f32 %v1029, %v1030
        %v1032 = vrot.slane %v1031, 2
        %v1033 = vadd.f32 %v1031, %v1032
        %v1034 = vrot.slane %v1033, 1
        %v1035 = vadd.f32 %v1033, %v1034
        %v1036 = vsel %vm550, %v999, 0.0
        %v1037 = vsel %vm550, %v1000, 0.0
        %v1038 = vadd.f32 %v1036, %v1037
        %v1039 = vrot.slane %v1038, 4
        %v1040 = vadd.f32 %v1038, %v1039
        %v1041 = vrot.slane %v1040, 2
        %v1042 = vadd.f32 %v1040, %v1041
        %v1043 = vrot.slane %v1042, 1
        %v1044 = vadd.f32 %v1042, %v1043
        %v1045 = vsel %vm550, %v1001, 0.0
        %v1046 = vsel %vm550, %v1002, 0.0
        %v1047 = vadd.f32 %v1045, %v1046
        %v1048 = vrot.slane %v1047, 4
        %v1049 = vadd.f32 %v1047, %v1048
        %v1050 = vrot.slane %v1049, 2
        %v1051 = vadd.f32 %v1049, %v1050
        %v1052 = vrot.slane %v1051, 1
        %v1053 = vadd.f32 %v1051, %v1052
        %v1054 = vsel %vm550, %v1003, 0.0
        %v1055 = vsel %vm550, %v1004, 0.0
        %v1056 = vadd.f32 %v1054, %v1055
        %v1057 = vrot.slane %v1056, 4
        %v1058 = vadd.f32 %v1056, %v1057
        %v1059 = vrot.slane %v1058, 2
        %v1060 = vadd.f32 %v1058, %v1059
        %v1061 = vrot.slane %v1060, 1
        %v1062 = vadd.f32 %v1060, %v1061
        %v1063 = vsel %vm550, %v1005, 0.0
        %v1064 = vsel %vm550, %v1006, 0.0
        %v1065 = vadd.f32 %v1063, %v1064
        %v1066 = vrot.slane %v1065, 4
        %v1067 = vadd.f32 %v1065, %v1066
        %v1068 = vrot.slane %v1067, 2
        %v1069 = vadd.f32 %v1067, %v1068
        %v1070 = vrot.slane %v1069, 1
        %v1071 = vadd.f32 %v1069, %v1070
        %v1072 = vsel %vm550, %v1007, 0.0
        %v1073 = vsel %vm550, %v1008, 0.0
        %v1074 = vadd.f32 %v1072, %v1073
        %v1075 = vrot.slane %v1074, 4
        %v1076 = vadd.f32 %v1074, %v1075
        %v1077 = vrot.slane %v1076, 2
        %v1078 = vadd.f32 %v1076, %v1077
        %v1079 = vrot.slane %v1078, 1
        %v1080 = vadd.f32 %v1078, %v1079
        %v1081 = vsel %vm888, %v902, 0.0
        %1082 = vadd.xlane.f32.xlu0 %v1081
        %v1083 = vpop.xlane.xlu0 %1082
        %v1084 = vld [vmem:[#allocation10] sm:$0xff]
        %v1085 = vld [vmem:[#allocation10 + $0x8] sm:$0xff]
        %v1086 = vld [vmem:[#allocation10 + $0x10] sm:$0xff]
        %v1087 = vld [vmem:[#allocation10 + $0x18] sm:$0xff]
        %v1088 = vld [vmem:[%s6] sm:$0x1]
        %v1090 = vlaneseq
        %v1091 = vshrl.u32 %v1090, 7
        %v1092 = vsub.s32 0, %v1091
        %v1093 = vrot.slane %v1088, %v1092
        %v1095 = vmul.f32 %v1083, %v1093
        %v1104 = vsel %vm872, %v1026, %v1017
        %v1105 = vsel %vm874, %v1035, %v1104
        %v1106 = vsel %vm876, %v1044, %v1105
        %v1107 = vsel %vm878, %v1053, %v1106
        %v1108 = vsel %vm880, %v1062, %v1107
        %v1109 = vsel %vm882, %v1071, %v1108
        %v1110 = vsel %vm884, %v1080, %v1109
        %v1111 = vsel %vm550, %v1110, 0
        %1113 = vmatprep.subr.mxu0 0.0
        %1114 = vmatpush1.msra.mxu0 0.0
        %1115 = vmatprep.subr.mxu0 0.0
        %1116 = vmatpush1.msra.mxu0 0.0
        %1117 = vmatprep.subr.mxu0 0.0
        %1118 = vmatpush1.msra.mxu0 0.0
        %1119 = vmatprep.subr.mxu0 0.0
        %1120 = vmatpush1.msra.mxu0 0.0
        %1121 = vmatprep.subr.mxu0 0.0
        %1122 = vmatpush1.msra.mxu0 0.0
        %1123 = vmatprep.subr.mxu0 0.0
        %1124 = vmatpush1.msra.mxu0 0.0
        %1125 = vmatprep.subr.mxu0 0.0
        %1126 = vmatpush1.msra.mxu0 0.0
        %1127 = vmatprep.subr.mxu0 0.0
        %1128 = vmatpush1.msra.mxu0 0.0
        %1129 = vmatprep.subr.mxu0 0.0
        %1130 = vmatpush1.msra.mxu0 0.0
        %1131 = vmatprep.subr.mxu0 0.0
        %1132 = vmatpush1.msra.mxu0 0.0
        %1133 = vmatprep.subr.mxu0 0.0
        %1134 = vmatpush1.msra.mxu0 0.0
        %1135 = vmatprep.subr.mxu0 0.0
        %1136 = vmatpush1.msra.mxu0 0.0
        %1137 = vmatprep.subr.mxu0 0.0
        %1138 = vmatpush1.msra.mxu0 %v1087
        %1139 = vmatprep.subr.mxu0 0.0
        %1140 = vmatpush1.msra.mxu0 %v1086
        %1141 = vmatprep.subr.mxu0 0.0
        %1142 = vmatpush1.msra.mxu0 %v1085
        %1143 = vmatprep.subr.mxu0 0.0
        %1144 = vmatpush1.msra.mxu0 %v1084
        %1145 = vmatprep.subr.mxu0 0.0
        %1146 = vmatpush2.msra.mxu0 0.0
        %1147 = vmatprep.subr.mxu0 0.0
        %1148 = vmatpush2.msra.mxu0 0.0
        %1149 = vmatprep.subr.mxu0 0.0
        %1150 = vmatpush2.msra.mxu0 0.0
        %1151 = vmatprep.subr.mxu0 0.0
        %1152 = vmatpush2.msra.mxu0 0.0
        %1153 = vmatprep.subr.mxu0 0.0
        %1154 = vmatpush2.msra.mxu0 0.0
        %1155 = vmatprep.subr.mxu0 0.0
        %1156 = vmatpush2.msra.mxu0 0.0
        %1157 = vmatprep.subr.mxu0 0.0
        %1158 = vmatpush2.msra.mxu0 0.0
        %1159 = vmatprep.subr.mxu0 0.0
        %1160 = vmatpush2.msra.mxu0 0.0
        %1161 = vmatprep.subr.mxu0 0.0
        %1162 = vmatpush2.msra.mxu0 0.0
        %1163 = vmatprep.subr.mxu0 0.0
        %1164 = vmatpush2.msra.mxu0 0.0
        %1165 = vmatprep.subr.mxu0 0.0
        %1166 = vmatpush2.msra.mxu0 0.0
        %1167 = vmatprep.subr.mxu0 0.0
        %1168 = vmatpush2.msra.mxu0 0.0
        %1169 = vmatprep.subr.mxu0 0.0
        %1170 = vmatpush2.msra.mxu0 0.0
        %1171 = vmatprep.subr.mxu0 0.0
        %1172 = vmatpush2.msra.mxu0 0.0
        %1173 = vmatprep.subr.mxu0 0.0
        %1174 = vmatpush2.msra.mxu0 0.0
        %1175 = vmatprep.subr.mxu0 0.0
        %1176 = vmatpush2.msra.mxu0 0.0
        %1177 = vmatprep.mubr.f32.mxu0 0.0
        %1178 = vmatmul.mubr.f32.gmra.mxu0 %v1111
        %v1179 = vpop.f32.mrf.mxu0
        %v1180 = vadd.f32 %v1095, %v1179
        %v1181 = vpop.f32.mrf.mxu0
        %1182 = vdwg.mxu0
        %1183 = vst [vmem:[%s496] sm:$0xff] %v1180
        %s1184 = sand.u32 %s233, 1
        %s1185 = scalar_lea.sflag [#allocation4], %s1184
        %s1186 = sand.u32 %s233, 1
        %s1187 = smul.addr %s1186, 8
        %s1188 = scalar_lea.vmem [#allocation13], %s1187
        %s1189 = sand.u32 %s259, 1
        %s1190 = scalar_lea.sflag [#allocation15], %s1189
        %s1191 = sand.u32 %s259, 1
        %s1192 = smul.addr %s1191, 8
        %s1193 = scalar_lea.vmem [#allocation14], %s1192
        // Predicated region
        $region77: #{tpu_custom_call.1} parent=51 // pred_check
          %p1194 = pneg %p243
        $region78: #{tpu_custom_call.1} parent=51 // pred_check_branch
          %1196 = sbr.rel (%p1194) target = $region80
        $region79: #{tpu_custom_call.1} parent=51 // pred_region
          %s1198 = ssub.s32 128, 128
          %1199 = vsyncadd %s1185, %s1198
          %s1200 = smul.addr %s37, 128
          %s1201 = scalar_lea.hbm %s8, %s1200
          %s1203 = sshll.u32 %s1188, 4
          %s1204 = int_to_ptr.vmem [resolvable:$true] %s1203
          %1206 = dma.vmem_to_hbm [thread:$0]  %s1204, 128, %s1201, %s1185
        $region80: #{tpu_custom_call.1} parent=51 // pred_fallthru
          _
        // Predicated region
        $region81: #{tpu_custom_call.1} parent=51 // pred_check
          %p1207 = pneg %p269
        $region82: #{tpu_custom_call.1} parent=51 // pred_check_branch
          %1209 = sbr.rel (%p1207) target = $region84
        $region83: #{tpu_custom_call.1} parent=51 // pred_region
          %s1211 = ssub.s32 128, 128
          %1212 = vsyncadd %s1190, %s1211
          %s1213 = smul.addr %s37, 128
          %s1214 = scalar_lea.hbm %s9, %s1213
          %s1216 = sshll.u32 %s1193, 4
          %s1217 = int_to_ptr.vmem [resolvable:$true] %s1216
          %1219 = dma.vmem_to_hbm [thread:$0]  %s1217, 128, %s1214, %s1190
        $region84: #{tpu_custom_call.1} parent=51 // pred_fallthru
          _
      $region52: #{tpu_custom_call.1} parent=5 // pred_fallthru
        _
      %p1220 = scmp.le.s32.totalorder 2, %s32
      // Predicated region
      $region85: #{tpu_custom_call.1} parent=5 // pred_check
        %p1221 = pneg %p1220
      $region86: #{tpu_custom_call.1} parent=5 // pred_check_branch
        %1223 = sbr.rel (%p1221) target = $region88
      $region87: #{tpu_custom_call.1} parent=5 // pred_region
        %s1224 = ssub.s32 %s32, 2
        // Predicated region
        $region89: #{tpu_custom_call.1} parent=87 // pred_check
          %p1225 = pneg %p249
        $region90: #{tpu_custom_call.1} parent=87 // pred_check_branch
          %1227 = sbr.rel (%p1225) target = $region92
        $region91: #{tpu_custom_call.1} parent=87 // pred_region
          %s1228 = sand.u32 %s234, 1
          %s1229 = scalar_lea.sflag [#allocation4], %s1228
          %s1230 = sand.u32 %s234, 1
          %s1231 = smul.addr %s1230, 8
          %s1232 = scalar_lea.vmem [#allocation13], %s1231
          %1233 = dma.done %s1229, 128
        $region92: #{tpu_custom_call.1} parent=87 // pred_fallthru
          _
        // Predicated region
        $region93: #{tpu_custom_call.1} parent=87 // pred_check
          %p1234 = pneg %p275
        $region94: #{tpu_custom_call.1} parent=87 // pred_check_branch
          %1236 = sbr.rel (%p1234) target = $region96
        $region95: #{tpu_custom_call.1} parent=87 // pred_region
          %s1237 = sand.u32 %s260, 1
          %s1238 = scalar_lea.sflag [#allocation15], %s1237
          %s1239 = sand.u32 %s260, 1
          %s1240 = smul.addr %s1239, 8
          %s1241 = scalar_lea.vmem [#allocation14], %s1240
          %1242 = dma.done %s1238, 128
        $region96: #{tpu_custom_call.1} parent=87 // pred_fallthru
          _
      $region88: #{tpu_custom_call.1} parent=5 // pred_fallthru
        _
    $region6: #{tpu_custom_call.1} parent=1 // loop_footer
      %s36 = sadd.s32 1, %s32
    $region7: #{tpu_custom_call.1} parent=1 // loop_footer_branch
      %31 = sbr.rel target = $region3
    $region8: #{tpu_custom_call.1} parent=1 // loop_exit
      _
    %1243 = vsyncpa [#allocation3], 1
    %s1244 = scalar_lea.sflag [#allocation3], 1
    %1245 = vsyncpa %s1244, 1
    %1246 = vsyncpa [#allocation6], 1
    %s1247 = scalar_lea.sflag [#allocation6], 1
    %1248 = vsyncpa %s1247, 1
    %1249 = vsyncpa [#allocation9], 1
    %1250 = vsyncpa [#allocation12], 1
    %s1251 = scalar_lea.sflag [#allocation12], 1
    %1252 = vsyncpa %s1251, 1
    %1253 = vsyncpa [#allocation4], 1
    %s1254 = scalar_lea.sflag [#allocation4], 1
    %1255 = vsyncpa %s1254, 1
    %1256 = vsyncpa [#allocation15], 1
    %s1257 = scalar_lea.sflag [#allocation15], 1
    %1258 = vsyncpa %s1257, 1

</llo_original>
